<compile_context>
chip_gen: v7x
topology: tpu7x:2x2x1
jax: 0.10.0
libtpu: 0.0.40
codegen_flags: <defaults>
</compile_context>

<pallas_src>
import jax
import jax.numpy as jnp
from jax.experimental import pallas as pl
from jax.experimental.pallas import tpu as pltpu


def _block_kernel(x_ref, w1_ref, b1_ref, w2_ref, b2_ref, o_ref):
    # x_ref : (Bt, Cin, L)      activations, PyTorch NCL layout (L on lanes)
    # w1_ref: (K*Cout, Cin)     conv1 weight, K taps stacked along rows
    # b1_ref: (Cout, 1)
    # w2_ref: (K*Cout, Cout)    conv2 weight, K taps stacked along rows
    # b2_ref: (Cout, 1)
    # o_ref : (Bt, Cout, L2)
    Bt = x_ref.shape[0]
    L = x_ref.shape[2]
    Cout = b1_ref.shape[0]
    K = w1_ref.shape[0] // Cout
    L1 = L - K + 1            # length after conv1 (valid, stride 1)
    L2 = o_ref.shape[2]       # length after conv2

    w1 = w1_ref[...]
    w2 = w2_ref[...]
    b1 = b1_ref[...]          # (Cout, 1) broadcasts over length
    b2 = b2_ref[...]

    def conv_relu(w_cat, inp, bias, l_out):
        # One MXU matmul covers all K taps; accumulate in f32.
        t = jnp.dot(w_cat, inp, preferred_element_type=jnp.float32)  # (K*Cout, Lin)
        # Tap k lives in rows [k*Cout, (k+1)*Cout)  (sublane-aligned since
        # Cout % 8 == 0) and must be shifted by k along the lane axis; the
        # static lane-offset slice lowers to an XLU realign, which is idle here.
        acc = t[0:Cout, 0:l_out]
        for k in range(1, K):                 # K is a tiny static constant
            acc = acc + t[k * Cout:(k + 1) * Cout, k:k + l_out]
        return jnp.maximum(acc + bias, 0.0)   # (Cout, l_out), f32 bias+ReLU

    for b in range(Bt):                       # small static batch tile -> unrolled
        xb = x_ref[b]                                        # (Cin, L)
        h = conv_relu(w1, xb, b1, L1)                        # (Cout, L1) f32
        y = conv_relu(w2, h.astype(w2.dtype), b2, L2)        # (Cout, L2) f32
        o_ref[b] = y.astype(o_ref.dtype)


def _pick_batch_tile(B, per_elem_bytes):
    """Batch elements per grid step: large enough to amortize per-step
    pipeline overhead, small enough to stay well inside VMEM (sized with v7x's
    64 MiB in mind), and leaving >= 2 parallel grid steps for v7x's 2 TCs."""
    if B <= 1:
        return 1
    budget = 4 * 1024 * 1024                      # per-block activation budget
    cap = min(B // 2, 16, max(1, budget // max(per_elem_bytes, 1)))
    for d in range(max(cap, 1), 0, -1):
        if B % d == 0:
            return d
    return 1


def block_forward(x_ncl, w1, b1, w2, b2, *, compute_dtype=jnp.float32,
                  batch_tile=None):
    """Block forward. x_ncl: (B, Cin, L); w1: (Cout, Cin, K); b1: (Cout,);
    w2: (Cout, Cout, K); b2: (Cout,). Returns (B, Cout, L - 2*(K-1))."""
    B, Cin, L = x_ncl.shape
    Cout, _, K = w1.shape
    L1 = L - K + 1
    L2 = L1 - K + 1
    out_dtype = x_ncl.dtype

    # Stack the K taps along the output-channel (row) axis:
    #   w_cat[k*Cout + co, ci] = w[co, ci, k]
    w1_cat = jnp.transpose(w1, (2, 0, 1)).reshape(K * Cout, Cin)
    w2_cat = jnp.transpose(w2, (2, 0, 1)).reshape(K * Cout, Cout)
    b1_2d = b1.reshape(Cout, 1).astype(jnp.float32)
    b2_2d = b2.reshape(Cout, 1).astype(jnp.float32)

    # MXU operand dtype (bf16 on v6e/v7x halves DMA bytes and ~doubles MXU
    # throughput); accumulation stays f32 inside the kernel.
    x_in = x_ncl.astype(compute_dtype)
    w1_cat = w1_cat.astype(compute_dtype)
    w2_cat = w2_cat.astype(compute_dtype)

    per_elem_bytes = (Cin * L + Cout * L2) * 4        # f32 upper bound
    bt = batch_tile if batch_tile is not None else _pick_batch_tile(B, per_elem_bytes)
    assert B % bt == 0, (B, bt)
    grid = (B // bt,)

    # TODO(synk): add an L-tiled path (blocks over L with a 2*(K-1) halo) for
    # long sequences so activation blocks stay well under v7x's 64 MiB VMEM.
    return pl.pallas_call(
        _block_kernel,
        out_shape=jax.ShapeDtypeStruct((B, Cout, L2), out_dtype),
        grid=grid,
        in_specs=[
            pl.BlockSpec((bt, Cin, L), lambda i: (i, 0, 0)),
            pl.BlockSpec((K * Cout, Cin), lambda i: (0, 0)),
            pl.BlockSpec((Cout, 1), lambda i: (0, 0)),
            pl.BlockSpec((K * Cout, Cout), lambda i: (0, 0)),
            pl.BlockSpec((Cout, 1), lambda i: (0, 0)),
        ],
        out_specs=pl.BlockSpec((bt, Cout, L2), lambda i: (i, 0, 0)),
        compiler_params=pltpu.CompilerParams(
            dimension_semantics=("parallel",)),
    )(x_in, w1_cat, b1_2d, w2_cat, b2_2d)


# ----- pure-JAX reference (PyTorch Conv1d semantics, valid conv, stride 1) ----
def _conv1d_ref(x, w, b):
    # x: (B, Cin, L), w: (Cout, Cin, K), b: (Cout,)
    B, Cin, L = x.shape
    Cout, _, K = w.shape
    Lout = L - K + 1
    cols = jnp.stack([x[:, :, k:k + Lout] for k in range(K)], axis=-1)  # (B,Cin,Lout,K)
    return jnp.einsum("bclk,ock->bol", cols, w) + b[None, :, None]


def _block_ref(x, w1, b1, w2, b2):
    h = jnp.maximum(_conv1d_ref(x, w1, b1), 0.0)
    return jnp.maximum(_conv1d_ref(h, w2, b2), 0.0)


if __name__ == "__main__":
    # Small shapes consistent with the module: Conv1d input is (B, in_ch, L).
    B, in_ch, out_ch, K, L = 4, 4, 8, 3, 16

    key = jax.random.PRNGKey(0)
    k1, k2, k3, k4, k5 = jax.random.split(key, 5)

    x = jax.random.normal(k1, (B, in_ch, L), dtype=jnp.float32)
    # Deterministic parameter init (uniform, roughly PyTorch-like scale).
    bound1 = 1.0 / (in_ch * K) ** 0.5
    bound2 = 1.0 / (out_ch * K) ** 0.5
    w1 = jax.random.uniform(k2, (out_ch, in_ch, K), jnp.float32, -bound1, bound1)
    b1 = jax.random.uniform(k3, (out_ch,), jnp.float32, -bound1, bound1)
    w2 = jax.random.uniform(k4, (out_ch, out_ch, K), jnp.float32, -bound2, bound2)
    b2 = jax.random.uniform(k5, (out_ch,), jnp.float32, -bound2, bound2)

    ref = _block_ref(x, w1, b1, w2, b2)

    # f32 path (tight tolerance).
    out = jax.block_until_ready(block_forward(x, w1, b1, w2, b2))
    assert out.shape == (B, out_ch, L - 2 * (K - 1)), out.shape
    assert jnp.allclose(out, ref, atol=1e-5, rtol=1e-5), "f32 mismatch vs reference"

    # bf16 MXU-operand path (v6e/v7x), f32 accumulation -> looser tolerance.
    out_bf16 = jax.block_until_ready(
        block_forward(x, w1, b1, w2, b2, compute_dtype=jnp.bfloat16))
    assert out_bf16.dtype == jnp.float32
    assert jnp.allclose(out_bf16, ref, atol=5e-2, rtol=5e-2), "bf16 mismatch vs reference"

    print("KERNEL_OK")
</pallas_src>

<mosaic_0001>
module attributes {stable_mosaic.version = 11 : i64} {
  func.func @_block_kernel(%arg0: i32, %arg1: memref<2x4x16xf32, #tpu.memory_space<vmem>>, %arg2: memref<24x4xf32, #tpu.memory_space<vmem>>, %arg3: memref<8x1xf32, #tpu.memory_space<vmem>>, %arg4: memref<24x8xf32, #tpu.memory_space<vmem>>, %arg5: memref<8x1xf32, #tpu.memory_space<vmem>>, %arg6: memref<2x8x12xf32, #tpu.memory_space<vmem>>) attributes {dimension_semantics = [#tpu.dimension_semantics<parallel>], iteration_bounds = array<i64: 2>, scalar_prefetch = 0 : i64, scratch_operands = 0 : i64, tpu.core_type = #tpu.core_type<tc>, window_params = [{transform_indices = @transform_0, window_bounds = array<i64: 2, 4, 16>}, {pipeline_mode = #tpu.pipeline_mode<synchronous>, transform_indices = @transform_1, window_bounds = array<i64: 24, 4>}, {pipeline_mode = #tpu.pipeline_mode<synchronous>, transform_indices = @transform_2, window_bounds = array<i64: 8, 1>}, {pipeline_mode = #tpu.pipeline_mode<synchronous>, transform_indices = @transform_3, window_bounds = array<i64: 24, 8>}, {pipeline_mode = #tpu.pipeline_mode<synchronous>, transform_indices = @transform_4, window_bounds = array<i64: 8, 1>}, {transform_indices = @transform_5, window_bounds = array<i64: 2, 8, 12>}]} {
    %c0 = arith.constant 0 : index
    %c0_0 = arith.constant 0 : index
    %0 = vector.load %arg2[%c0, %c0_0] : memref<24x4xf32, #tpu.memory_space<vmem>>, vector<24x4xf32>
    %c0_1 = arith.constant 0 : index
    %c0_2 = arith.constant 0 : index
    %1 = vector.load %arg4[%c0_1, %c0_2] : memref<24x8xf32, #tpu.memory_space<vmem>>, vector<24x8xf32>
    %c0_3 = arith.constant 0 : index
    %c0_4 = arith.constant 0 : index
    %2 = vector.load %arg3[%c0_3, %c0_4] : memref<8x1xf32, #tpu.memory_space<vmem>>, vector<8x1xf32>
    %c0_5 = arith.constant 0 : index
    %c0_6 = arith.constant 0 : index
    %3 = vector.load %arg5[%c0_5, %c0_6] : memref<8x1xf32, #tpu.memory_space<vmem>>, vector<8x1xf32>
    %c0_7 = arith.constant 0 : index
    %c0_8 = arith.constant 0 : index
    %c0_9 = arith.constant 0 : index
    %4 = vector.load %arg1[%c0_7, %c0_8, %c0_9] : memref<2x4x16xf32, #tpu.memory_space<vmem>>, vector<1x4x16xf32>
    %5 = vector.shape_cast %4 : vector<1x4x16xf32> to vector<4x16xf32>
    %cst = arith.constant dense<0.000000e+00> : vector<24x16xf32>
    %6 = tpu.matmul %0, %5, %cst {dimension_numbers = #tpu.dot_dimension_numbers<[1], [0], [0], [1], [0, 0, 1, 1], [], []>} : vector<24x4xf32>, vector<4x16xf32>, vector<24x16xf32> -> vector<24x16xf32>
    %7 = vector.extract_strided_slice %6 {offsets = [0, 0], sizes = [8, 14], strides = [1, 1]} : vector<24x16xf32> to vector<8x14xf32>
    %8 = vector.extract_strided_slice %6 {offsets = [8, 1], sizes = [8, 14], strides = [1, 1]} : vector<24x16xf32> to vector<8x14xf32>
    %9 = arith.addf %7, %8 : vector<8x14xf32>
    %10 = vector.extract_strided_slice %6 {offsets = [16, 2], sizes = [8, 14], strides = [1, 1]} : vector<24x16xf32> to vector<8x14xf32>
    %11 = arith.addf %9, %10 : vector<8x14xf32>
    %12 = vector.broadcast %2 : vector<8x1xf32> to vector<8x14xf32>
    %13 = arith.addf %11, %12 : vector<8x14xf32>
    %cst_10 = arith.constant 0.000000e+00 : f32
    %14 = vector.broadcast %cst_10 : f32 to vector<8x14xf32>
    %15 = arith.maximumf %13, %14 : vector<8x14xf32>
    %cst_11 = arith.constant dense<0.000000e+00> : vector<24x14xf32>
    %16 = tpu.matmul %1, %15, %cst_11 {dimension_numbers = #tpu.dot_dimension_numbers<[1], [0], [0], [1], [0, 0, 1, 1], [], []>} : vector<24x8xf32>, vector<8x14xf32>, vector<24x14xf32> -> vector<24x14xf32>
    %17 = vector.extract_strided_slice %16 {offsets = [0, 0], sizes = [8, 12], strides = [1, 1]} : vector<24x14xf32> to vector<8x12xf32>
    %18 = vector.extract_strided_slice %16 {offsets = [8, 1], sizes = [8, 12], strides = [1, 1]} : vector<24x14xf32> to vector<8x12xf32>
    %19 = arith.addf %17, %18 : vector<8x12xf32>
    %20 = vector.extract_strided_slice %16 {offsets = [16, 2], sizes = [8, 12], strides = [1, 1]} : vector<24x14xf32> to vector<8x12xf32>
    %21 = arith.addf %19, %20 : vector<8x12xf32>
    %22 = vector.broadcast %3 : vector<8x1xf32> to vector<8x12xf32>
    %23 = arith.addf %21, %22 : vector<8x12xf32>
    %cst_12 = arith.constant 0.000000e+00 : f32
    %24 = vector.broadcast %cst_12 : f32 to vector<8x12xf32>
    %25 = arith.maximumf %23, %24 : vector<8x12xf32>
    %c0_13 = arith.constant 0 : index
    %c0_14 = arith.constant 0 : index
    %c0_15 = arith.constant 0 : index
    %26 = vector.load %arg6[%c0_13, %c0_14, %c0_15] : memref<2x8x12xf32, #tpu.memory_space<vmem>>, vector<1x8x12xf32>
    %27 = vector.shape_cast %26 : vector<1x8x12xf32> to vector<8x12xf32>
    %28 = vector.shape_cast %25 : vector<8x12xf32> to vector<1x8x12xf32>
    tpu.vector_store %arg6[%c0_13, %c0_14, %c0_15], %28 {strides = array<i32>} : memref<2x8x12xf32, #tpu.memory_space<vmem>>, vector<1x8x12xf32>,
    %c1 = arith.constant 1 : index
    %c0_16 = arith.constant 0 : index
    %c0_17 = arith.constant 0 : index
    %29 = vector.load %arg1[%c1, %c0_16, %c0_17] : memref<2x4x16xf32, #tpu.memory_space<vmem>>, vector<1x4x16xf32>
    %30 = vector.shape_cast %29 : vector<1x4x16xf32> to vector<4x16xf32>
    %cst_18 = arith.constant dense<0.000000e+00> : vector<24x16xf32>
    %31 = tpu.matmul %0, %30, %cst_18 {dimension_numbers = #tpu.dot_dimension_numbers<[1], [0], [0], [1], [0, 0, 1, 1], [], []>} : vector<24x4xf32>, vector<4x16xf32>, vector<24x16xf32> -> vector<24x16xf32>
    %32 = vector.extract_strided_slice %31 {offsets = [0, 0], sizes = [8, 14], strides = [1, 1]} : vector<24x16xf32> to vector<8x14xf32>
    %33 = vector.extract_strided_slice %31 {offsets = [8, 1], sizes = [8, 14], strides = [1, 1]} : vector<24x16xf32> to vector<8x14xf32>
    %34 = arith.addf %32, %33 : vector<8x14xf32>
    %35 = vector.extract_strided_slice %31 {offsets = [16, 2], sizes = [8, 14], strides = [1, 1]} : vector<24x16xf32> to vector<8x14xf32>
    %36 = arith.addf %34, %35 : vector<8x14xf32>
    %37 = vector.broadcast %2 : vector<8x1xf32> to vector<8x14xf32>
    %38 = arith.addf %36, %37 : vector<8x14xf32>
    %cst_19 = arith.constant 0.000000e+00 : f32
    %39 = vector.broadcast %cst_19 : f32 to vector<8x14xf32>
    %40 = arith.maximumf %38, %39 : vector<8x14xf32>
    %cst_20 = arith.constant dense<0.000000e+00> : vector<24x14xf32>
    %41 = tpu.matmul %1, %40, %cst_20 {dimension_numbers = #tpu.dot_dimension_numbers<[1], [0], [0], [1], [0, 0, 1, 1], [], []>} : vector<24x8xf32>, vector<8x14xf32>, vector<24x14xf32> -> vector<24x14xf32>
    %42 = vector.extract_strided_slice %41 {offsets = [0, 0], sizes = [8, 12], strides = [1, 1]} : vector<24x14xf32> to vector<8x12xf32>
    %43 = vector.extract_strided_slice %41 {offsets = [8, 1], sizes = [8, 12], strides = [1, 1]} : vector<24x14xf32> to vector<8x12xf32>
    %44 = arith.addf %42, %43 : vector<8x12xf32>
    %45 = vector.extract_strided_slice %41 {offsets = [16, 2], sizes = [8, 12], strides = [1, 1]} : vector<24x14xf32> to vector<8x12xf32>
    %46 = arith.addf %44, %45 : vector<8x12xf32>
    %47 = vector.broadcast %3 : vector<8x1xf32> to vector<8x12xf32>
    %48 = arith.addf %46, %47 : vector<8x12xf32>
    %cst_21 = arith.constant 0.000000e+00 : f32
    %49 = vector.broadcast %cst_21 : f32 to vector<8x12xf32>
    %50 = arith.maximumf %48, %49 : vector<8x12xf32>
    %c1_22 = arith.constant 1 : index
    %c0_23 = arith.constant 0 : index
    %c0_24 = arith.constant 0 : index
    %51 = vector.load %arg6[%c1_22, %c0_23, %c0_24] : memref<2x8x12xf32, #tpu.memory_space<vmem>>, vector<1x8x12xf32>
    %52 = vector.shape_cast %51 : vector<1x8x12xf32> to vector<8x12xf32>
    %53 = vector.shape_cast %50 : vector<8x12xf32> to vector<1x8x12xf32>
    tpu.vector_store %arg6[%c1_22, %c0_23, %c0_24], %53 {strides = array<i32>} : memref<2x8x12xf32, #tpu.memory_space<vmem>>, vector<1x8x12xf32>,
    return
  }
  func.func @transform_0(%arg0: i32) -> (i32, i32, i32) {
    %c0_i32 = arith.constant 0 : i32
    %c0_i32_0 = arith.constant 0 : i32
    %c0_i32_1 = arith.constant 0 : i32
    return %arg0, %c0_i32, %c0_i32_0 : i32, i32, i32
  }
  func.func @transform_1(%arg0: i32) -> (i32, i32) {
    %c0_i32 = arith.constant 0 : i32
    %c0_i32_0 = arith.constant 0 : i32
    %c0_i32_1 = arith.constant 0 : i32
    return %c0_i32, %c0_i32_0 : i32, i32
  }
  func.func @transform_2(%arg0: i32) -> (i32, i32) {
    %c0_i32 = arith.constant 0 : i32
    %c0_i32_0 = arith.constant 0 : i32
    %c0_i32_1 = arith.constant 0 : i32
    return %c0_i32, %c0_i32_0 : i32, i32
  }
  func.func @transform_3(%arg0: i32) -> (i32, i32) {
    %c0_i32 = arith.constant 0 : i32
    %c0_i32_0 = arith.constant 0 : i32
    %c0_i32_1 = arith.constant 0 : i32
    return %c0_i32, %c0_i32_0 : i32, i32
  }
  func.func @transform_4(%arg0: i32) -> (i32, i32) {
    %c0_i32 = arith.constant 0 : i32
    %c0_i32_0 = arith.constant 0 : i32
    %c0_i32_1 = arith.constant 0 : i32
    return %c0_i32, %c0_i32_0 : i32, i32
  }
  func.func @transform_5(%arg0: i32) -> (i32, i32, i32) {
    %c0_i32 = arith.constant 0 : i32
    %c0_i32_0 = arith.constant 0 : i32
    %c0_i32_1 = arith.constant 0 : i32
    return %arg0, %c0_i32, %c0_i32_0 : i32, i32, i32
  }
}

</mosaic_0001>

<llo_original>
// kernel: tpu_custom_call.1
$region0: #{tpu_custom_call.1}
  #allocation0 [shape = 'u32[]', space=smem, size = 0x4, offset = 0x4, fixed_abs, tag = 'smem constant byte address 0x4 - core index']
  #allocation1 [shape = 'u32[144,128]{1,0:T(1,128)}', space=vmem, size = 0x12000, scoped, tag = 'internal scratch']
  %s0 = inlined_call_operand.vmem [shape: f32[4,4,16], index: 0, kind: input, shape index: {}]
  %s1 = inlined_call_operand.vmem [shape: f32[24,4], index: 1, kind: input, shape index: {}]
  %s2 = inlined_call_operand.vmem [shape: f32[8,1], index: 2, kind: input, shape index: {}]
  %s3 = inlined_call_operand.vmem [shape: f32[24,8], index: 3, kind: input, shape index: {}]
  %s4 = inlined_call_operand.vmem [shape: f32[8,1], index: 4, kind: input, shape index: {}]
  %s5 = inlined_call_operand.hbm [shape: f32[4,8,12], index: 5, kind: output, shape index: {}]
  %s6 = sld [smem:[#allocation0]]
  $region53: #{tpu_custom_call.1} parent=0
    _
  %s8 = ssub.s32 1, %s6
  %s9 = scalar_select 0, %s8, %s6
  $region1: #{tpu_custom_call.1} parent=0
    #allocation2 [shape = 'u8[16384]{0}', space=vmem, size = 0x4000, scoped, tag = 'output window, operand 0']
    #allocation3 [shape = 's32[2]{0}', space=sflag, size = 0x8, scoped, tag = 'scoped memory for tpu_custom_call.1']
    %10 = vsyncpa [#allocation3], 0
    %s11 = scalar_lea.sflag [#allocation3], 1
    %12 = vsyncpa %s11, 0
    loop: start=0, step=1, limit=4
    $region2: #{tpu_custom_call.1} parent=1 // loop_pre_header
      _
    $region3: #{tpu_custom_call.1} parent=1 // loop_header
      %s14 = sphi 0, %s18
      %p15 = scmp.ge.s32.totalorder %s14, 4
      %s24 = sphi 0, %s26
      %s27 = sphi 0, %s24
      %s28 = sphi 0, %s27
      %s44 = sphi 0, %s28
      %s48 = sphi 0, %s48
      %s50 = sphi 0, %s48
      %s51 = sphi 0, %s50
      %s65 = sphi 0, %s51
      %s69 = sphi 0, %s69
      %s71 = sphi 0, %s69
      %s72 = sphi 0, %s71
      %s86 = sphi 0, %s72
      %s90 = sphi 0, %s90
      %s92 = sphi 0, %s90
      %s93 = sphi 0, %s92
      %s107 = sphi 0, %s93
      %s111 = sphi 0, %s111
      %s113 = sphi 0, %s111
      %s114 = sphi 0, %s113
      %s128 = sphi 0, %s114
      %s134 = sphi 0, %s136
      %s137 = sphi 0, %s134
      %s138 = sphi 0, %s137
      %s154 = sphi 0, %s138
    $region4: #{tpu_custom_call.1} parent=1 // loop_header_branch
      %17 = sbr.rel (%p15) target = $region8
    $region5: #{tpu_custom_call.1} parent=1 // loop_body
      %s19 = ssub.s32 %s14, 1
      %s20 = ssub.s32 %s14, 2
      %s21 = sadd.s32 %s14, 1
      %s22 = ssub.s32 %s14, %s21
      %p23 = scmp.eq.s32.totalorder %s22, 0
      %s25 = sadd.s32 %s24, 1
      %s26 = scalar_select %p23, %s24, %s25
      %p29 = pneg %p23
      %p30 = scmp.eq.s32.totalorder %s14, 1
      %p31 = por %p29, %p30
      %p32 = scmp.ne.s32.totalorder %s24, %s27
      %p33 = scmp.eq.s32.totalorder %s14, 0
      %p34 = por %p32, %p33
      %p35 = scmp.ne.s32.totalorder %s24, %s27
      %p36 = scmp.eq.s32.totalorder %s19, 1
      %p37 = por %p35, %p36
      %p38 = scmp.ne.s32.totalorder %s27, %s28
      %p39 = scmp.eq.s32.totalorder %s19, 0
      %p40 = por %p38, %p39
      %p41 = scmp.ne.s32.totalorder %s27, %s28
      %p42 = scmp.eq.s32.totalorder %s20, 1
      %p43 = por %p41, %p42
      %p45 = scmp.ne.s32.totalorder %s28, %s44
      %p46 = scmp.eq.s32.totalorder %s20, 0
      %p47 = por %p45, %p46
      %s49 = sadd.s32 %s48, 1
      %p52 = scmp.eq.s32.totalorder %s14, 1
      %p53 = scmp.ne.s32.totalorder %s48, %s50
      %p54 = scmp.eq.s32.totalorder %s14, 0
      %p55 = por %p53, %p54
      %p56 = scmp.ne.s32.totalorder %s48, %s50
      %p57 = scmp.eq.s32.totalorder %s19, 1
      %p58 = por %p56, %p57
      %p59 = scmp.ne.s32.totalorder %s50, %s51
      %p60 = scmp.eq.s32.totalorder %s19, 0
      %p61 = por %p59, %p60
      %p62 = scmp.ne.s32.totalorder %s50, %s51
      %p63 = scmp.eq.s32.totalorder %s20, 1
      %p64 = por %p62, %p63
      %p66 = scmp.ne.s32.totalorder %s51, %s65
      %p67 = scmp.eq.s32.totalorder %s20, 0
      %p68 = por %p66, %p67
      %s70 = sadd.s32 %s69, 1
      %p73 = scmp.eq.s32.totalorder %s14, 1
      %p74 = scmp.ne.s32.totalorder %s69, %s71
      %p75 = scmp.eq.s32.totalorder %s14, 0
      %p76 = por %p74, %p75
      %p77 = scmp.ne.s32.totalorder %s69, %s71
      %p78 = scmp.eq.s32.totalorder %s19, 1
      %p79 = por %p77, %p78
      %p80 = scmp.ne.s32.totalorder %s71, %s72
      %p81 = scmp.eq.s32.totalorder %s19, 0
      %p82 = por %p80, %p81
      %p83 = scmp.ne.s32.totalorder %s71, %s72
      %p84 = scmp.eq.s32.totalorder %s20, 1
      %p85 = por %p83, %p84
      %p87 = scmp.ne.s32.totalorder %s72, %s86
      %p88 = scmp.eq.s32.totalorder %s20, 0
      %p89 = por %p87, %p88
      %s91 = sadd.s32 %s90, 1
      %p94 = scmp.eq.s32.totalorder %s14, 1
      %p95 = scmp.ne.s32.totalorder %s90, %s92
      %p96 = scmp.eq.s32.totalorder %s14, 0
      %p97 = por %p95, %p96
      %p98 = scmp.ne.s32.totalorder %s90, %s92
      %p99 = scmp.eq.s32.totalorder %s19, 1
      %p100 = por %p98, %p99
      %p101 = scmp.ne.s32.totalorder %s92, %s93
      %p102 = scmp.eq.s32.totalorder %s19, 0
      %p103 = por %p101, %p102
      %p104 = scmp.ne.s32.totalorder %s92, %s93
      %p105 = scmp.eq.s32.totalorder %s20, 1
      %p106 = por %p104, %p105
      %p108 = scmp.ne.s32.totalorder %s93, %s107
      %p109 = scmp.eq.s32.totalorder %s20, 0
      %p110 = por %p108, %p109
      %s112 = sadd.s32 %s111, 1
      %p115 = scmp.eq.s32.totalorder %s14, 1
      %p116 = scmp.ne.s32.totalorder %s111, %s113
      %p117 = scmp.eq.s32.totalorder %s14, 0
      %p118 = por %p116, %p117
      %p119 = scmp.ne.s32.totalorder %s111, %s113
      %p120 = scmp.eq.s32.totalorder %s19, 1
      %p121 = por %p119, %p120
      %p122 = scmp.ne.s32.totalorder %s113, %s114
      %p123 = scmp.eq.s32.totalorder %s19, 0
      %p124 = por %p122, %p123
      %p125 = scmp.ne.s32.totalorder %s113, %s114
      %p126 = scmp.eq.s32.totalorder %s20, 1
      %p127 = por %p125, %p126
      %p129 = scmp.ne.s32.totalorder %s114, %s128
      %p130 = scmp.eq.s32.totalorder %s20, 0
      %p131 = por %p129, %p130
      %s132 = ssub.s32 %s14, %s21
      %p133 = scmp.eq.s32.totalorder %s132, 0
      %s135 = sadd.s32 %s134, 1
      %s136 = scalar_select %p133, %s134, %s135
      %p139 = pneg %p133
      %p140 = scmp.eq.s32.totalorder %s14, 1
      %p141 = por %p139, %p140
      %p142 = scmp.ne.s32.totalorder %s134, %s137
      %p143 = scmp.eq.s32.totalorder %s14, 0
      %p144 = por %p142, %p143
      %p145 = scmp.ne.s32.totalorder %s134, %s137
      %p146 = scmp.eq.s32.totalorder %s19, 1
      %p147 = por %p145, %p146
      %p148 = scmp.ne.s32.totalorder %s137, %s138
      %p149 = scmp.eq.s32.totalorder %s19, 0
      %p150 = por %p148, %p149
      %p151 = scmp.ne.s32.totalorder %s137, %s138
      %p152 = scmp.eq.s32.totalorder %s20, 1
      %p153 = por %p151, %p152
      %p155 = scmp.ne.s32.totalorder %s138, %s154
      %p156 = scmp.eq.s32.totalorder %s20, 0
      %p157 = por %p155, %p156
      %p158 = scmp.le.s32.totalorder 1, %s14
      %p159 = scmp.lt.s32.totalorder %s14, 3
      %p160 = pnand %p158, %p159
      %p161 = pneg %p160
      // Predicated region
      $region9: #{tpu_custom_call.1} parent=5 // pred_check
        _
      $region10: #{tpu_custom_call.1} parent=5 // pred_check_branch
        %163 = sbr.rel (%p160) target = $region12
      $region11: #{tpu_custom_call.1} parent=5 // pred_region
        %s164 = ssub.s32 %s14, 1
        // Predicated region
        $region13: #{tpu_custom_call.1} parent=11 // pred_check
          %p165 = pneg %p61
        $region14: #{tpu_custom_call.1} parent=11 // pred_check_branch
          %167 = sbr.rel (%p165) target = $region16
        $region15: #{tpu_custom_call.1} parent=11 // pred_region
          _
        $region16: #{tpu_custom_call.1} parent=11 // pred_fallthru
          _
        // Predicated region
        $region17: #{tpu_custom_call.1} parent=11 // pred_check
          %p168 = pneg %p82
        $region18: #{tpu_custom_call.1} parent=11 // pred_check_branch
          %170 = sbr.rel (%p168) target = $region20
        $region19: #{tpu_custom_call.1} parent=11 // pred_region
          _
        $region20: #{tpu_custom_call.1} parent=11 // pred_fallthru
          _
        // Predicated region
        $region21: #{tpu_custom_call.1} parent=11 // pred_check
          %p171 = pneg %p103
        $region22: #{tpu_custom_call.1} parent=11 // pred_check_branch
          %173 = sbr.rel (%p171) target = $region24
        $region23: #{tpu_custom_call.1} parent=11 // pred_region
          _
        $region24: #{tpu_custom_call.1} parent=11 // pred_fallthru
          _
        // Predicated region
        $region25: #{tpu_custom_call.1} parent=11 // pred_check
          %p174 = pneg %p124
        $region26: #{tpu_custom_call.1} parent=11 // pred_check_branch
          %176 = sbr.rel (%p174) target = $region28
        $region27: #{tpu_custom_call.1} parent=11 // pred_region
          _
        $region28: #{tpu_custom_call.1} parent=11 // pred_fallthru
          _
      $region12: #{tpu_custom_call.1} parent=5 // pred_fallthru
        _
      %p177 = scmp.lt.s32.totalorder %s14, 2
      // Predicated region
      $region29: #{tpu_custom_call.1} parent=5 // pred_check
        %p178 = pneg %p177
      $region30: #{tpu_custom_call.1} parent=5 // pred_check_branch
        %180 = sbr.rel (%p178) target = $region32
      $region31: #{tpu_custom_call.1} parent=5 // pred_region
        // Predicated region
        $region33: #{tpu_custom_call.1} parent=31 // pred_check
          %p181 = pneg %p34
        $region34: #{tpu_custom_call.1} parent=31 // pred_check_branch
          %183 = sbr.rel (%p181) target = $region36
        $region35: #{tpu_custom_call.1} parent=31 // pred_region
          %s184 = smul.u32 2, %s14
          %p185 = scmp.lt.s32.totalorder %s184, 3
          %s186 = scalar_select %p185, %s184, 3
          %s187 = smul.addr %s186, 4
          %s188 = scalar_lea.vmem %s0, %s187
          %s189 = smul.u32 2, %s14
        $region36: #{tpu_custom_call.1} parent=31 // pred_fallthru
          _
      $region32: #{tpu_custom_call.1} parent=5 // pred_fallthru
        _
      %p190 = scmp.le.s32.totalorder 1, %s14
      %p191 = scmp.lt.s32.totalorder %s14, 3
      %p192 = pnand %p190, %p191
      %p193 = pneg %p192
      // Predicated region
      $region37: #{tpu_custom_call.1} parent=5 // pred_check
        _
      $region38: #{tpu_custom_call.1} parent=5 // pred_check_branch
        %195 = sbr.rel (%p192) target = $region40
      $region39: #{tpu_custom_call.1} parent=5 // pred_region
        %s196 = ssub.s32 %s14, 1
        %s197 = smul.u32 2, %s19
        %p198 = scmp.lt.s32.totalorder %s197, 3
        %s199 = scalar_select %p198, %s197, 3
        %s200 = smul.addr %s199, 4
        %s201 = scalar_lea.vmem %s0, %s200
        %p202 = pneg %p40
        %p203 = pneg %p37
        %p204 = pneg %p61
        %p205 = pneg %p58
        %p206 = pneg %p82
        %p207 = pneg %p79
        %p208 = pneg %p103
        %p209 = pneg %p100
        %p210 = pneg %p124
        %p211 = pneg %p121
        %p212 = pneg %p150
        %p213 = pneg %p147
        %s214 = sand.u32 %s137, 1
        %s215 = scalar_lea.sflag [#allocation3], %s214
        %s216 = sand.u32 %s137, 1
        %s217 = smul.addr %s216, 16
        %s218 = scalar_lea.vmem [#allocation2], %s217
        %s219 = smul.u32 2, %s19
        %p220 = scmp.lt.s32.totalorder %s219, 3
        %s221 = scalar_select %p220, %s219, 3
        %s222 = smul.addr %s221, 4
        %s223 = scalar_lea.vmem %s0, %s222
        %s224 = smul.u32 2, %s19
        %s225 = smul.u32 2, %s19
        %v226 = vld [vmem:[%s1] sm:$0xff]
        %v227 = vld [vmem:[%s1 + $0x8] sm:$0xff]
        %v228 = vld [vmem:[%s1 + $0x10] sm:$0xff]
        %v229 = vld [vmem:[%s3] sm:$0xff]
        %v230 = vld [vmem:[%s3 + $0x8] sm:$0xff]
        %v231 = vld [vmem:[%s3 + $0x10] sm:$0xff]
        %v232 = vld [vmem:[%s2] sm:$0xff]
        %v233 = vld [vmem:[%s4] sm:$0xff]
        %v234 = vld [vmem:[%s223] sm:$0xf]
        %vm235 = vcmask 31744
        %v237 = vsel %vm235, %v226, 0
        %v240 = vsel %vm235, %v227, 0
        %v243 = vsel %vm235, %v228, 0
        %vm245 = vcmask 1043456
        %v247 = vsel %vm245, %v234, 0
        %249 = vmatprep.subr.mxu0 0.0
        %250 = vmatpush1.msra.mxu0 %v247
        %251 = vmatprep.subr.mxu0 0.0
        %252 = vmatpush1.msra.mxu0 0.0
        %253 = vmatprep.subr.mxu0 0.0
        %254 = vmatpush1.msra.mxu0 0.0
        %255 = vmatprep.subr.mxu0 0.0
        %256 = vmatpush1.msra.mxu0 0.0
        %257 = vmatprep.subr.mxu0 0.0
        %258 = vmatpush1.msra.mxu0 0.0
        %259 = vmatprep.subr.mxu0 0.0
        %260 = vmatpush1.msra.mxu0 0.0
        %261 = vmatprep.subr.mxu0 0.0
        %262 = vmatpush1.msra.mxu0 0.0
        %263 = vmatprep.subr.mxu0 0.0
        %264 = vmatpush1.msra.mxu0 0.0
        %265 = vmatprep.subr.mxu0 0.0
        %266 = vmatpush1.msra.mxu0 0.0
        %267 = vmatprep.subr.mxu0 0.0
        %268 = vmatpush1.msra.mxu0 0.0
        %269 = vmatprep.subr.mxu0 0.0
        %270 = vmatpush1.msra.mxu0 0.0
        %271 = vmatprep.subr.mxu0 0.0
        %272 = vmatpush1.msra.mxu0 0.0
        %273 = vmatprep.subr.mxu0 0.0
        %274 = vmatpush1.msra.mxu0 0.0
        %275 = vmatprep.subr.mxu0 0.0
        %276 = vmatpush1.msra.mxu0 0.0
        %277 = vmatprep.subr.mxu0 0.0
        %278 = vmatpush1.msra.mxu0 0.0
        %279 = vmatprep.subr.mxu0 0.0
        %280 = vmatpush1.msra.mxu0 0.0
        %281 = vmatprep.subr.mxu0 0.0
        %282 = vmatpush1.msra.mxu0 0.0
        %283 = vmatprep.subr.mxu0 0.0
        %284 = vmatpush1.msra.mxu0 0.0
        %285 = vmatprep.subr.mxu0 0.0
        %286 = vmatpush1.msra.mxu0 0.0
        %287 = vmatprep.subr.mxu0 0.0
        %288 = vmatpush1.msra.mxu0 0.0
        %289 = vmatprep.subr.mxu0 0.0
        %290 = vmatpush1.msra.mxu0 0.0
        %291 = vmatprep.subr.mxu0 0.0
        %292 = vmatpush1.msra.mxu0 0.0
        %293 = vmatprep.subr.mxu0 0.0
        %294 = vmatpush1.msra.mxu0 0.0
        %295 = vmatprep.subr.mxu0 0.0
        %296 = vmatpush1.msra.mxu0 0.0
        %297 = vmatprep.subr.mxu0 0.0
        %298 = vmatpush1.msra.mxu0 0.0
        %299 = vmatprep.subr.mxu0 0.0
        %300 = vmatpush1.msra.mxu0 0.0
        %301 = vmatprep.subr.mxu0 0.0
        %302 = vmatpush1.msra.mxu0 0.0
        %303 = vmatprep.subr.mxu0 0.0
        %304 = vmatpush1.msra.mxu0 0.0
        %305 = vmatprep.subr.mxu0 0.0
        %306 = vmatpush1.msra.mxu0 0.0
        %307 = vmatprep.subr.mxu0 0.0
        %308 = vmatpush1.msra.mxu0 0.0
        %309 = vmatprep.subr.mxu0 0.0
        %310 = vmatpush1.msra.mxu0 0.0
        %311 = vmatprep.subr.mxu0 0.0
        %312 = vmatpush1.msra.mxu0 0.0
        %313 = vmatprep.mubr.f32.mxu0 0.0
        %314 = vmatmul.mubr.f32.gmra.mrb[0].mxu0 %v237
        %v315 = vpop.f32.mrb[0].mxu0
        %v316 = vadd.f32 0.0, %v315
        %v317 = vpop.f32.mrb[0].mxu0
        %318 = vmatprep.mubr.f32.mxu0 0.0
        %319 = vmatmul.mubr.f32.gmra.mrb[0].mxu0 %v240
        %v320 = vpop.f32.mrb[0].mxu0
        %v321 = vadd.f32 0.0, %v320
        %v322 = vpop.f32.mrb[0].mxu0
        %323 = vmatprep.mubr.f32.mxu0 0.0
        %324 = vmatmul.mubr.f32.gmra.mrb[0].mxu0 %v243
        %v325 = vpop.f32.mrb[0].mxu0
        %v326 = vadd.f32 0.0, %v325
        %v327 = vpop.f32.mrb[0].mxu0
        %328 = vdwg.mxu0
        %330 = vrot.lane.b32.xlu0 %v321, 127
        %v331 = vpop.permute.xlu0 %330
        %v333 = vadd.f32 %v316, %v331
        %335 = vrot.lane.b32.xlu0 %v326, 126
        %v336 = vpop.permute.xlu0 %335
        %v338 = vadd.f32 %v333, %v336
        %340 = vset.pattern.permute.xlu0 0
        %341 = vperm.xlu0 %340, %v232
        %v342 = vpop.permute.xlu0 %341
        %v344 = vadd.f32 %v338, %v342
        %v345 = vmax.f32 %v344, 0.0
        %vm346 = vcmask 64512
        %v348 = vsel %vm346, %v229, 0
        %v351 = vsel %vm346, %v230, 0
        %v354 = vsel %vm346, %v231, 0
        %356 = vmatprep.subr.mxu0 0.0
        %357 = vmatpush1.msra.mxu0 %v345
        %358 = vmatprep.subr.mxu0 0.0
        %359 = vmatpush1.msra.mxu0 0.0
        %360 = vmatprep.subr.mxu0 0.0
        %361 = vmatpush1.msra.mxu0 0.0
        %362 = vmatprep.subr.mxu0 0.0
        %363 = vmatpush1.msra.mxu0 0.0
        %364 = vmatprep.subr.mxu0 0.0
        %365 = vmatpush1.msra.mxu0 0.0
        %366 = vmatprep.subr.mxu0 0.0
        %367 = vmatpush1.msra.mxu0 0.0
        %368 = vmatprep.subr.mxu0 0.0
        %369 = vmatpush1.msra.mxu0 0.0
        %370 = vmatprep.subr.mxu0 0.0
        %371 = vmatpush1.msra.mxu0 0.0
        %372 = vmatprep.subr.mxu0 0.0
        %373 = vmatpush1.msra.mxu0 0.0
        %374 = vmatprep.subr.mxu0 0.0
        %375 = vmatpush1.msra.mxu0 0.0
        %376 = vmatprep.subr.mxu0 0.0
        %377 = vmatpush1.msra.mxu0 0.0
        %378 = vmatprep.subr.mxu0 0.0
        %379 = vmatpush1.msra.mxu0 0.0
        %380 = vmatprep.subr.mxu0 0.0
        %381 = vmatpush1.msra.mxu0 0.0
        %382 = vmatprep.subr.mxu0 0.0
        %383 = vmatpush1.msra.mxu0 0.0
        %384 = vmatprep.subr.mxu0 0.0
        %385 = vmatpush1.msra.mxu0 0.0
        %386 = vmatprep.subr.mxu0 0.0
        %387 = vmatpush1.msra.mxu0 0.0
        %388 = vmatprep.subr.mxu0 0.0
        %389 = vmatpush1.msra.mxu0 0.0
        %390 = vmatprep.subr.mxu0 0.0
        %391 = vmatpush1.msra.mxu0 0.0
        %392 = vmatprep.subr.mxu0 0.0
        %393 = vmatpush1.msra.mxu0 0.0
        %394 = vmatprep.subr.mxu0 0.0
        %395 = vmatpush1.msra.mxu0 0.0
        %396 = vmatprep.subr.mxu0 0.0
        %397 = vmatpush1.msra.mxu0 0.0
        %398 = vmatprep.subr.mxu0 0.0
        %399 = vmatpush1.msra.mxu0 0.0
        %400 = vmatprep.subr.mxu0 0.0
        %401 = vmatpush1.msra.mxu0 0.0
        %402 = vmatprep.subr.mxu0 0.0
        %403 = vmatpush1.msra.mxu0 0.0
        %404 = vmatprep.subr.mxu0 0.0
        %405 = vmatpush1.msra.mxu0 0.0
        %406 = vmatprep.subr.mxu0 0.0
        %407 = vmatpush1.msra.mxu0 0.0
        %408 = vmatprep.subr.mxu0 0.0
        %409 = vmatpush1.msra.mxu0 0.0
        %410 = vmatprep.subr.mxu0 0.0
        %411 = vmatpush1.msra.mxu0 0.0
        %412 = vmatprep.subr.mxu0 0.0
        %413 = vmatpush1.msra.mxu0 0.0
        %414 = vmatprep.subr.mxu0 0.0
        %415 = vmatpush1.msra.mxu0 0.0
        %416 = vmatprep.subr.mxu0 0.0
        %417 = vmatpush1.msra.mxu0 0.0
        %418 = vmatprep.subr.mxu0 0.0
        %419 = vmatpush1.msra.mxu0 0.0
        %420 = vmatprep.mubr.f32.mxu0 0.0
        %421 = vmatmul.mubr.f32.gmra.mrb[0].mxu0 %v348
        %v422 = vpop.f32.mrb[0].mxu0
        %v423 = vadd.f32 0.0, %v422
        %v424 = vpop.f32.mrb[0].mxu0
        %425 = vmatprep.mubr.f32.mxu0 0.0
        %426 = vmatmul.mubr.f32.gmra.mrb[0].mxu0 %v351
        %v427 = vpop.f32.mrb[0].mxu0
        %v428 = vadd.f32 0.0, %v427
        %v429 = vpop.f32.mrb[0].mxu0
        %430 = vmatprep.mubr.f32.mxu0 0.0
        %431 = vmatmul.mubr.f32.gmra.mrb[0].mxu0 %v354
        %v432 = vpop.f32.mrb[0].mxu0
        %v433 = vadd.f32 0.0, %v432
        %v434 = vpop.f32.mrb[0].mxu0
        %435 = vdwg.mxu0
        %437 = vrot.lane.b32.xlu0 %v428, 127
        %v438 = vpop.permute.xlu0 %437
        %v440 = vadd.f32 %v423, %v438
        %442 = vrot.lane.b32.xlu0 %v433, 126
        %v443 = vpop.permute.xlu0 %442
        %v445 = vadd.f32 %v440, %v443
        %447 = vset.pattern.permute.xlu0 0
        %448 = vperm.xlu0 %447, %v233
        %v449 = vpop.permute.xlu0 %448
        %v451 = vadd.f32 %v445, %v449
        %v452 = vmax.f32 %v451, 0.0
        %vm453 = vcmask 97280
        %454 = vst.msk [vmem:[%s218] sm:$0xff] %vm453, %v452
        %s455 = scalar_lea.vmem %s223, 4
        %v456 = vld [vmem:[%s455] sm:$0xf]
        %v458 = vsel %vm245, %v456, 0
        %460 = vmatprep.subr.mxu0 0.0
        %461 = vmatpush1.msra.mxu0 %v458
        %462 = vmatprep.subr.mxu0 0.0
        %463 = vmatpush1.msra.mxu0 0.0
        %464 = vmatprep.subr.mxu0 0.0
        %465 = vmatpush1.msra.mxu0 0.0
        %466 = vmatprep.subr.mxu0 0.0
        %467 = vmatpush1.msra.mxu0 0.0
        %468 = vmatprep.subr.mxu0 0.0
        %469 = vmatpush1.msra.mxu0 0.0
        %470 = vmatprep.subr.mxu0 0.0
        %471 = vmatpush1.msra.mxu0 0.0
        %472 = vmatprep.subr.mxu0 0.0
        %473 = vmatpush1.msra.mxu0 0.0
        %474 = vmatprep.subr.mxu0 0.0
        %475 = vmatpush1.msra.mxu0 0.0
        %476 = vmatprep.subr.mxu0 0.0
        %477 = vmatpush1.msra.mxu0 0.0
        %478 = vmatprep.subr.mxu0 0.0
        %479 = vmatpush1.msra.mxu0 0.0
        %480 = vmatprep.subr.mxu0 0.0
        %481 = vmatpush1.msra.mxu0 0.0
        %482 = vmatprep.subr.mxu0 0.0
        %483 = vmatpush1.msra.mxu0 0.0
        %484 = vmatprep.subr.mxu0 0.0
        %485 = vmatpush1.msra.mxu0 0.0
        %486 = vmatprep.subr.mxu0 0.0
        %487 = vmatpush1.msra.mxu0 0.0
        %488 = vmatprep.subr.mxu0 0.0
        %489 = vmatpush1.msra.mxu0 0.0
        %490 = vmatprep.subr.mxu0 0.0
        %491 = vmatpush1.msra.mxu0 0.0
        %492 = vmatprep.subr.mxu0 0.0
        %493 = vmatpush1.msra.mxu0 0.0
        %494 = vmatprep.subr.mxu0 0.0
        %495 = vmatpush1.msra.mxu0 0.0
        %496 = vmatprep.subr.mxu0 0.0
        %497 = vmatpush1.msra.mxu0 0.0
        %498 = vmatprep.subr.mxu0 0.0
        %499 = vmatpush1.msra.mxu0 0.0
        %500 = vmatprep.subr.mxu0 0.0
        %501 = vmatpush1.msra.mxu0 0.0
        %502 = vmatprep.subr.mxu0 0.0
        %503 = vmatpush1.msra.mxu0 0.0
        %504 = vmatprep.subr.mxu0 0.0
        %505 = vmatpush1.msra.mxu0 0.0
        %506 = vmatprep.subr.mxu0 0.0
        %507 = vmatpush1.msra.mxu0 0.0
        %508 = vmatprep.subr.mxu0 0.0
        %509 = vmatpush1.msra.mxu0 0.0
        %510 = vmatprep.subr.mxu0 0.0
        %511 = vmatpush1.msra.mxu0 0.0
        %512 = vmatprep.subr.mxu0 0.0
        %513 = vmatpush1.msra.mxu0 0.0
        %514 = vmatprep.subr.mxu0 0.0
        %515 = vmatpush1.msra.mxu0 0.0
        %516 = vmatprep.subr.mxu0 0.0
        %517 = vmatpush1.msra.mxu0 0.0
        %518 = vmatprep.subr.mxu0 0.0
        %519 = vmatpush1.msra.mxu0 0.0
        %520 = vmatprep.subr.mxu0 0.0
        %521 = vmatpush1.msra.mxu0 0.0
        %522 = vmatprep.subr.mxu0 0.0
        %523 = vmatpush1.msra.mxu0 0.0
        %524 = vmatprep.mubr.f32.mxu0 0.0
        %525 = vmatmul.mubr.f32.gmra.mrb[0].mxu0 %v237
        %v526 = vpop.f32.mrb[0].mxu0
        %v527 = vadd.f32 0.0, %v526
        %v528 = vpop.f32.mrb[0].mxu0
        %529 = vmatprep.mubr.f32.mxu0 0.0
        %530 = vmatmul.mubr.f32.gmra.mrb[0].mxu0 %v240
        %v531 = vpop.f32.mrb[0].mxu0
        %v532 = vadd.f32 0.0, %v531
        %v533 = vpop.f32.mrb[0].mxu0
        %534 = vmatprep.mubr.f32.mxu0 0.0
        %535 = vmatmul.mubr.f32.gmra.mrb[0].mxu0 %v243
        %v536 = vpop.f32.mrb[0].mxu0
        %v537 = vadd.f32 0.0, %v536
        %v538 = vpop.f32.mrb[0].mxu0
        %539 = vdwg.mxu0
        %541 = vrot.lane.b32.xlu0 %v532, 127
        %v542 = vpop.permute.xlu0 %541
        %v544 = vadd.f32 %v527, %v542
        %546 = vrot.lane.b32.xlu0 %v537, 126
        %v547 = vpop.permute.xlu0 %546
        %v549 = vadd.f32 %v544, %v547
        %v550 = vadd.f32 %v549, %v342
        %v551 = vmax.f32 %v550, 0.0
        %552 = vmatprep.subr.mxu0 0.0
        %553 = vmatpush1.msra.mxu0 %v551
        %554 = vmatprep.subr.mxu0 0.0
        %555 = vmatpush1.msra.mxu0 0.0
        %556 = vmatprep.subr.mxu0 0.0
        %557 = vmatpush1.msra.mxu0 0.0
        %558 = vmatprep.subr.mxu0 0.0
        %559 = vmatpush1.msra.mxu0 0.0
        %560 = vmatprep.subr.mxu0 0.0
        %561 = vmatpush1.msra.mxu0 0.0
        %562 = vmatprep.subr.mxu0 0.0
        %563 = vmatpush1.msra.mxu0 0.0
        %564 = vmatprep.subr.mxu0 0.0
        %565 = vmatpush1.msra.mxu0 0.0
        %566 = vmatprep.subr.mxu0 0.0
        %567 = vmatpush1.msra.mxu0 0.0
        %568 = vmatprep.subr.mxu0 0.0
        %569 = vmatpush1.msra.mxu0 0.0
        %570 = vmatprep.subr.mxu0 0.0
        %571 = vmatpush1.msra.mxu0 0.0
        %572 = vmatprep.subr.mxu0 0.0
        %573 = vmatpush1.msra.mxu0 0.0
        %574 = vmatprep.subr.mxu0 0.0
        %575 = vmatpush1.msra.mxu0 0.0
        %576 = vmatprep.subr.mxu0 0.0
        %577 = vmatpush1.msra.mxu0 0.0
        %578 = vmatprep.subr.mxu0 0.0
        %579 = vmatpush1.msra.mxu0 0.0
        %580 = vmatprep.subr.mxu0 0.0
        %581 = vmatpush1.msra.mxu0 0.0
        %582 = vmatprep.subr.mxu0 0.0
        %583 = vmatpush1.msra.mxu0 0.0
        %584 = vmatprep.subr.mxu0 0.0
        %585 = vmatpush1.msra.mxu0 0.0
        %586 = vmatprep.subr.mxu0 0.0
        %587 = vmatpush1.msra.mxu0 0.0
        %588 = vmatprep.subr.mxu0 0.0
        %589 = vmatpush1.msra.mxu0 0.0
        %590 = vmatprep.subr.mxu0 0.0
        %591 = vmatpush1.msra.mxu0 0.0
        %592 = vmatprep.subr.mxu0 0.0
        %593 = vmatpush1.msra.mxu0 0.0
        %594 = vmatprep.subr.mxu0 0.0
        %595 = vmatpush1.msra.mxu0 0.0
        %596 = vmatprep.subr.mxu0 0.0
        %597 = vmatpush1.msra.mxu0 0.0
        %598 = vmatprep.subr.mxu0 0.0
        %599 = vmatpush1.msra.mxu0 0.0
        %600 = vmatprep.subr.mxu0 0.0
        %601 = vmatpush1.msra.mxu0 0.0
        %602 = vmatprep.subr.mxu0 0.0
        %603 = vmatpush1.msra.mxu0 0.0
        %604 = vmatprep.subr.mxu0 0.0
        %605 = vmatpush1.msra.mxu0 0.0
        %606 = vmatprep.subr.mxu0 0.0
        %607 = vmatpush1.msra.mxu0 0.0
        %608 = vmatprep.subr.mxu0 0.0
        %609 = vmatpush1.msra.mxu0 0.0
        %610 = vmatprep.subr.mxu0 0.0
        %611 = vmatpush1.msra.mxu0 0.0
        %612 = vmatprep.subr.mxu0 0.0
        %613 = vmatpush1.msra.mxu0 0.0
        %614 = vmatprep.subr.mxu0 0.0
        %615 = vmatpush1.msra.mxu0 0.0
        %616 = vmatprep.mubr.f32.mxu0 0.0
        %617 = vmatmul.mubr.f32.gmra.mrb[0].mxu0 %v348
        %v618 = vpop.f32.mrb[0].mxu0
        %v619 = vadd.f32 0.0, %v618
        %v620 = vpop.f32.mrb[0].mxu0
        %621 = vmatprep.mubr.f32.mxu0 0.0
        %622 = vmatmul.mubr.f32.gmra.mrb[0].mxu0 %v351
        %v623 = vpop.f32.mrb[0].mxu0
        %v624 = vadd.f32 0.0, %v623
        %v625 = vpop.f32.mrb[0].mxu0
        %626 = vmatprep.mubr.f32.mxu0 0.0
        %627 = vmatmul.mubr.f32.gmra.mrb[0].mxu0 %v354
        %v628 = vpop.f32.mrb[0].mxu0
        %v629 = vadd.f32 0.0, %v628
        %v630 = vpop.f32.mrb[0].mxu0
        %631 = vdwg.mxu0
        %633 = vrot.lane.b32.xlu0 %v624, 127
        %v634 = vpop.permute.xlu0 %633
        %v636 = vadd.f32 %v619, %v634
        %638 = vrot.lane.b32.xlu0 %v629, 126
        %v639 = vpop.permute.xlu0 %638
        %v641 = vadd.f32 %v636, %v639
        %v642 = vadd.f32 %v641, %v449
        %v643 = vmax.f32 %v642, 0.0
        %s644 = scalar_lea.vmem %s218, 8 [#allocation2]
        %645 = vst.msk [vmem:[%s644] sm:$0xff] %vm453, %v643
        %s646 = sand.u32 %s137, 1
        %s647 = scalar_lea.sflag [#allocation3], %s646
        %s648 = sand.u32 %s137, 1
        %s649 = smul.addr %s648, 16
        %s650 = scalar_lea.vmem [#allocation2], %s649
        // Predicated region
        $region41: #{tpu_custom_call.1} parent=39 // pred_check
          %p651 = pneg %p147
        $region42: #{tpu_custom_call.1} parent=39 // pred_check_branch
          %653 = sbr.rel (%p651) target = $region44
        $region43: #{tpu_custom_call.1} parent=39 // pred_region
          %s654 = smul.u32 2, %s19
          %s656 = ssub.s32 256, 256
          %657 = vsyncadd %s647, %s656
          %s658 = smul.addr %s654, 128
          %s659 = scalar_lea.hbm %s5, %s658
          %s660 = sshll.u32 %s650, 4
          %s661 = int_to_ptr.vmem [resolvable:$true] %s660
          %666 = dma.vmem_to_hbm [thread:$0]  %s661, 256, %s659, %s647, 128, 128, 8
        $region44: #{tpu_custom_call.1} parent=39 // pred_fallthru
          _
      $region40: #{tpu_custom_call.1} parent=5 // pred_fallthru
        _
      %p667 = scmp.le.s32.totalorder 2, %s14
      // Predicated region
      $region45: #{tpu_custom_call.1} parent=5 // pred_check
        %p668 = pneg %p667
      $region46: #{tpu_custom_call.1} parent=5 // pred_check_branch
        %670 = sbr.rel (%p668) target = $region48
      $region47: #{tpu_custom_call.1} parent=5 // pred_region
        %s671 = ssub.s32 %s14, 2
        // Predicated region
        $region49: #{tpu_custom_call.1} parent=47 // pred_check
          %p672 = pneg %p153
        $region50: #{tpu_custom_call.1} parent=47 // pred_check_branch
          %674 = sbr.rel (%p672) target = $region52
        $region51: #{tpu_custom_call.1} parent=47 // pred_region
          %s675 = sand.u32 %s138, 1
          %s676 = scalar_lea.sflag [#allocation3], %s675
          %s677 = sand.u32 %s138, 1
          %s678 = smul.addr %s677, 16
          %s679 = scalar_lea.vmem [#allocation2], %s678
          %680 = dma.done %s676, 256
        $region52: #{tpu_custom_call.1} parent=47 // pred_fallthru
          _
      $region48: #{tpu_custom_call.1} parent=5 // pred_fallthru
        _
    $region6: #{tpu_custom_call.1} parent=1 // loop_footer
      %s18 = sadd.s32 1, %s14
    $region7: #{tpu_custom_call.1} parent=1 // loop_footer_branch
      %13 = sbr.rel target = $region3
    $region8: #{tpu_custom_call.1} parent=1 // loop_exit
      _
    %681 = vsyncpa [#allocation3], 1
    %s682 = scalar_lea.sflag [#allocation3], 1
    %683 = vsyncpa %s682, 1

</llo_original>
